<compile_context>
chip_gen: v5e
topology: v5e:2x2
jax: 0.10.0
libtpu: 0.0.40
codegen_flags: <defaults>
</compile_context>

<pallas_src>
import functools

import jax
import jax.numpy as jnp
from jax.experimental import pallas as pl
from jax.experimental.pallas import tpu as pltpu


def _round_up(x, m):
    return (x + m - 1) // m * m


def _cdiv(a, b):
    return -(-a // b)


# ------------------------------ Pallas kernels --------------------------------
def _linear_kernel(x_ref, w_ref, b_ref, o_ref):
    # x_ref: (tm, K) f32   w_ref: (K, Lp) bf16   b_ref: (1, Lp) f32   o_ref: (tm, Lp) f32
    acc = jnp.dot(x_ref[...].astype(jnp.bfloat16), w_ref[...],
                  preferred_element_type=jnp.float32)
    o_ref[...] = (acc + b_ref[...]).astype(o_ref.dtype)


def _linear_kernel_ksplit(x_ref, w_ref, b_ref, o_ref, acc_ref):
    # Same as above but with K tiled along the last grid axis; acc_ref is f32 VMEM.
    k = pl.program_id(1)

    @pl.when(k == 0)
    def _():
        acc_ref[...] = jnp.zeros_like(acc_ref)

    acc_ref[...] += jnp.dot(x_ref[...].astype(jnp.bfloat16), w_ref[...],
                            preferred_element_type=jnp.float32)

    @pl.when(k == pl.num_programs(1) - 1)
    def _():
        o_ref[...] = (acc_ref[...] + b_ref[...]).astype(o_ref.dtype)


# ------------------------------ tile planning ---------------------------------
_TM_CAP = 4096             # rows; amortizes the ~0.35us per-grid-step overhead at small K
_MEGACORE_MIN_ROWS = 512   # only force >=2 M tiles when there is real work to split


def _vmem_budget_bytes():
    cap = 64 * 1024 * 1024  # conservative (v7x physical) fallback
    try:
        cap = int(getattr(pltpu.get_tpu_info(), "vmem_capacity_bytes", cap))
    except Exception:
        pass
    return cap * 5 // 8     # ~40 MiB on v7x, ~80 MiB on v5e/v6e


def _plan_tiles(M, K, Lp, budget):
    """Pick (tm, tk, k_tiles) so the (double-)buffered tiles fit the VMEM budget."""
    m8 = _round_up(max(M, 1), 8)
    out_rows = 2 * Lp * 4                        # double-buffered f32 output rows

    # Full-K layout: weight resident & single-buffered, no accumulator scratch.
    fixed_full = K * Lp * 2 + Lp * 4             # bf16 weight + f32 bias
    per_row_full = 2 * K * 4 + out_rows          # double-buffered f32 x rows + out
    avail = budget - fixed_full
    tm = (avail // per_row_full) // 8 * 8 if avail > 0 else 0
    tk, k_tiles = K, 1

    # Tile K only when a single full-K block would collapse the row tile (huge masks).
    if tm < min(m8, 128) and K % 128 == 0 and K > 8192:
        d = 8192
        while d >= 128 and K % d:
            d -= 128
        tk, k_tiles = d, K // d
        fixed = 2 * tk * Lp * 2 + Lp * 4         # double-buffered weight slice + bias
        per_row = 2 * tk * 4 + out_rows + Lp * 4 # + f32 accumulator rows
        avail = budget - fixed
        tm = (avail // per_row) // 8 * 8 if avail > 0 else 0

    tm = max(min(tm, _TM_CAP, m8), 8)
    if m8 >= _MEGACORE_MIN_ROWS:                 # guarantee >=2 row tiles (v7x megacore)
        tm = min(tm, _round_up(_cdiv(m8, 2), 8))
    n_m = _cdiv(M, tm)                           # balance tiles -> bounded tail padding
    tm = max(_round_up(_cdiv(M, n_m), 8), 8)
    return tm, tk, k_tiles


# ------------------------------ pallas wrapper ---------------------------------
def linear_pallas(x2d, w, b):
    """x2d: (M, K) f32; w: (K, Lp) bf16; b: (1, Lp) f32 -> (M, Lp) f32.

    Lp must be a multiple of 128 (the module pads weight/bias once)."""
    M, K = x2d.shape
    Lp = w.shape[1]

    budget = _vmem_budget_bytes()
    tm, tk, k_tiles = _plan_tiles(M, K, Lp, budget)
    m_tiles = _cdiv(M, tm)

    if k_tiles == 1:
        kernel = _linear_kernel
        grid = (m_tiles,)
        in_specs = [
            pl.BlockSpec((tm, K), lambda i: (i, 0)),                 # streamed f32 rows
            pl.BlockSpec((K, Lp), lambda i: (0, 0),
                         pipeline_mode=pl.Buffered(1)),              # resident weight
            pl.BlockSpec((1, Lp), lambda i: (0, 0),
                         pipeline_mode=pl.Buffered(1)),              # resident bias
        ]
        out_specs = pl.BlockSpec((tm, Lp), lambda i: (i, 0))
        scratch_shapes = []
        dim_sem = ("parallel",)
        n_wbuf = 1
        acc_bytes = 0
    else:
        kernel = _linear_kernel_ksplit
        grid = (m_tiles, k_tiles)                                    # reduction axis last
        in_specs = [
            pl.BlockSpec((tm, tk), lambda i, k: (i, k)),
            pl.BlockSpec((tk, Lp), lambda i, k: (k, 0)),
            pl.BlockSpec((1, Lp), lambda i, k: (0, 0),
                         pipeline_mode=pl.Buffered(1)),
        ]
        out_specs = pl.BlockSpec((tm, Lp), lambda i, k: (i, 0))
        scratch_shapes = [pltpu.VMEM((tm, Lp), jnp.float32)]
        dim_sem = ("parallel", "arbitrary")
        n_wbuf = 2
        acc_bytes = tm * Lp * 4

    need = (n_wbuf * tk * Lp * 2 + Lp * 4
            + 2 * tm * tk * 4 + 2 * tm * Lp * 4 + acc_bytes)
    vmem_limit = int(max(min(need * 3 // 2, budget + (16 << 20)),
                         need + (2 << 20), 16 << 20))

    return pl.pallas_call(
        kernel,
        out_shape=jax.ShapeDtypeStruct((M, Lp), jnp.float32),
        grid=grid,
        in_specs=in_specs,
        out_specs=out_specs,
        scratch_shapes=scratch_shapes,
        compiler_params=pltpu.CompilerParams(
            dimension_semantics=dim_sem,
            vmem_limit_bytes=vmem_limit,
        ),
        cost_estimate=pl.CostEstimate(
            flops=2 * M * K * Lp,
            transcendentals=0,
            bytes_accessed=M * K * 4 + n_wbuf * K * Lp * 2 + M * Lp * 4 + Lp * 4,
        ),
    )(x2d, w, b)


# ------------------------- resize-fold (wrapper-side) --------------------------
def _nearest_src_indices(out_size, in_size):
    # torch F.interpolate(mode='nearest') semantics: src = floor(dst * in / out).
    # Integer arithmetic avoids float rounding near integer boundaries.
    return (jnp.arange(out_size, dtype=jnp.int32) * in_size) // out_size


def fold_resize_into_weight(w, size, in_h, in_w):
    """w: (size*size, L) f32.  Returns (in_h*in_w, L) such that
    nearest_resize(x, size, size).flatten() @ w == x.flatten() @ folded."""
    src_r = _nearest_src_indices(size, in_h)                        # (size,)
    src_c = _nearest_src_indices(size, in_w)                        # (size,)
    src_q = (src_r[:, None] * in_w + src_c[None, :]).reshape(-1)    # (size*size,)
    return jnp.zeros((in_h * in_w, w.shape[1]), w.dtype).at[src_q].add(w)


# ----------------------------- Module wrapper ---------------------------------
@functools.partial(jax.jit, static_argnames=("latent_size",))
def _encode(x, w_f, b_p, latent_size):
    B, C, H, W = x.shape
    x2d = x.reshape(B * C, H * W).astype(jnp.float32)   # no pad, no bf16 pre-cast
    y = linear_pallas(x2d, w_f, b_p)                     # (B*C, Lp) f32
    return y[:, :latent_size].reshape(B, C, latent_size)


class SingleLinearMaskEncoderPallas:
    def __init__(self, latent_size, size=128, key=jax.random.PRNGKey(0)):
        self.size = size
        self.latent_size = latent_size
        kw, kb = jax.random.split(key)
        fan_in = size * size
        bound = 1.0 / float(size)  # 1/sqrt(size^2): nn.Linear default init range
        # Stored transposed as (fan_in, latent) so the forward is x @ W.
        self.w = jax.random.uniform(kw, (fan_in, latent_size), jnp.float32, -bound, bound)
        self.b = jax.random.uniform(kb, (latent_size,), jnp.float32, -bound, bound)
        self._folded_cache = {}  # keyed by input (H, W)

    def _folded_params(self, in_h, in_w):
        ck = (in_h, in_w)
        if ck not in self._folded_cache:
            L = self.latent_size
            l_pad = _round_up(L, 128)                     # lane-dense output stores
            w_f = fold_resize_into_weight(self.w, self.size, in_h, in_w)  # (H*W, L) f32
            w_f = jnp.pad(w_f, ((0, 0), (0, l_pad - L))).astype(jnp.bfloat16)
            b_p = jnp.pad(self.b, (0, l_pad - L)).reshape(1, l_pad).astype(jnp.float32)
            self._folded_cache[ck] = (w_f, b_p)
        return self._folded_cache[ck]

    def __call__(self, x):
        # x: (B, C, H, W)
        _, _, H, W = x.shape
        w_f, b_p = self._folded_params(H, W)
        return _encode(x, w_f, b_p, latent_size=self.latent_size)


# ----------------------------- Reference (plain JAX) ---------------------------
def nearest_resize_nchw(x, out_h, out_w):
    _, _, H, W = x.shape
    x = jnp.take(x, _nearest_src_indices(out_h, H), axis=2)
    x = jnp.take(x, _nearest_src_indices(out_w, W), axis=3)
    return x


def reference_forward(enc, x):
    # Unfolded, full-precision reference matching the PyTorch module.
    B, C, _, _ = x.shape
    xu = nearest_resize_nchw(x, enc.size, enc.size).reshape(B, C, enc.size ** 2)
    return xu @ enc.w + enc.b


if __name__ == "__main__":
    key = jax.random.PRNGKey(0)
    kx, kp = jax.random.split(key)

    # Small shapes consistent with the module: batch=2, channels=4, spatial=16x16.
    B, C, H, W = 2, 4, 16, 16
    latent_size = 32
    x = jax.random.normal(kx, (B, C, H, W), jnp.float32)

    enc = SingleLinearMaskEncoderPallas(latent_size=latent_size, size=64, key=kp)

    out = jax.block_until_ready(enc(x))
    ref = jax.block_until_ready(reference_forward(enc, x))

    assert out.shape == (B, C, latent_size), out.shape
    # bf16 weights/activations on the MXU (f32 accumulate) -> loosened tolerance.
    assert jnp.allclose(out, ref, atol=5e-2, rtol=5e-2), float(jnp.max(jnp.abs(out - ref)))

    print("KERNEL_OK")
</pallas_src>

<mosaic_0001>
module attributes {stable_mosaic.version = 11 : i64} {
  func.func @_linear_kernel(%arg0: i32, %arg1: memref<8x256xf32, #tpu.memory_space<vmem>>, %arg2: memref<256x128xbf16, #tpu.memory_space<vmem>>, %arg3: memref<1x128xf32, #tpu.memory_space<vmem>>, %arg4: memref<8x128xf32, #tpu.memory_space<vmem>>) attributes {dimension_semantics = [#tpu.dimension_semantics<parallel>], iteration_bounds = array<i64: 1>, scalar_prefetch = 0 : i64, scratch_operands = 0 : i64, tpu.core_type = #tpu.core_type<tc>, window_params = [{transform_indices = @transform_0, window_bounds = array<i64: 8, 256>}, {pipeline_mode = #tpu.pipeline_mode<synchronous>, transform_indices = @transform_1, window_bounds = array<i64: 256, 128>}, {pipeline_mode = #tpu.pipeline_mode<synchronous>, transform_indices = @transform_2, window_bounds = array<i64: 1, 128>}, {transform_indices = @transform_3, window_bounds = array<i64: 8, 128>}]} {
    %c0 = arith.constant 0 : index
    %c0_0 = arith.constant 0 : index
    %0 = vector.load %arg1[%c0, %c0_0] : memref<8x256xf32, #tpu.memory_space<vmem>>, vector<8x256xf32>
    %1 = arith.truncf %0 : vector<8x256xf32> to vector<8x256xbf16>
    %c0_1 = arith.constant 0 : index
    %c0_2 = arith.constant 0 : index
    %2 = vector.load %arg2[%c0_1, %c0_2] : memref<256x128xbf16, #tpu.memory_space<vmem>>, vector<256x128xbf16>
    %cst = arith.constant dense<0.000000e+00> : vector<8x128xf32>
    %3 = tpu.matmul %1, %2, %cst {dimension_numbers = #tpu.dot_dimension_numbers<[1], [0], [0], [1], [0, 0, 1, 1], [], []>} : vector<8x256xbf16>, vector<256x128xbf16>, vector<8x128xf32> -> vector<8x128xf32>
    %c0_3 = arith.constant 0 : index
    %c0_4 = arith.constant 0 : index
    %4 = vector.load %arg3[%c0_3, %c0_4] : memref<1x128xf32, #tpu.memory_space<vmem>>, vector<1x128xf32>
    %5 = vector.broadcast %4 : vector<1x128xf32> to vector<8x128xf32>
    %6 = arith.addf %3, %5 : vector<8x128xf32>
    %c0_5 = arith.constant 0 : index
    %c0_6 = arith.constant 0 : index
    %7 = vector.load %arg4[%c0_5, %c0_6] : memref<8x128xf32, #tpu.memory_space<vmem>>, vector<8x128xf32>
    tpu.vector_store %arg4[%c0_5, %c0_6], %6 {strides = array<i32>} : memref<8x128xf32, #tpu.memory_space<vmem>>, vector<8x128xf32>,
    return
  }
  func.func @transform_0(%arg0: i32) -> (i32, i32) {
    %c0_i32 = arith.constant 0 : i32
    %c0_i32_0 = arith.constant 0 : i32
    return %arg0, %c0_i32 : i32, i32
  }
  func.func @transform_1(%arg0: i32) -> (i32, i32) {
    %c0_i32 = arith.constant 0 : i32
    %c0_i32_0 = arith.constant 0 : i32
    %c0_i32_1 = arith.constant 0 : i32
    return %c0_i32, %c0_i32_0 : i32, i32
  }
  func.func @transform_2(%arg0: i32) -> (i32, i32) {
    %c0_i32 = arith.constant 0 : i32
    %c0_i32_0 = arith.constant 0 : i32
    %c0_i32_1 = arith.constant 0 : i32
    return %c0_i32, %c0_i32_0 : i32, i32
  }
  func.func @transform_3(%arg0: i32) -> (i32, i32) {
    %c0_i32 = arith.constant 0 : i32
    %c0_i32_0 = arith.constant 0 : i32
    return %arg0, %c0_i32 : i32, i32
  }
}

</mosaic_0001>

<llo_original>
// kernel: _encode.1
$region0: #{_encode.1}
  #allocation0 [shape = 'u32[]', space=smem, size = 0x4, offset = 0x4, fixed_abs, tag = 'smem constant byte address 0x4 - core index']
  #allocation1 [shape = 'u32[72,128]{1,0:T(1,128)}', space=vmem, size = 0x9000, scoped, tag = 'internal scratch']
  %s0 = inlined_call_operand.vmem [shape: f32[8,256], index: 0, kind: input, shape index: {}]
  %s1 = inlined_call_operand.vmem [shape: bf16[256,128], index: 1, kind: input, shape index: {}]
  %s2 = inlined_call_operand.vmem [shape: f32[1,128], index: 2, kind: input, shape index: {}]
  %s3 = inlined_call_operand.hbm [shape: f32[8,128], index: 3, kind: output, shape index: {}]
  %s4 = sld [smem:[#allocation0]]
  $region22: #{_encode.1} parent=0
    _
  %s6 = ssub.s32 1, %s4
  %s7 = scalar_select 0, %s6, %s4
  $region1: #{_encode.1} parent=0
    #allocation2 [shape = 'u8[4096]{0}', space=vmem, size = 0x1000, scoped, tag = 'output window, operand 0, single buffered']
    #allocation3 [shape = 's32[1]{0}', space=sflag, size = 0x4, scoped, tag = 'scoped memory for _encode.1']
    %8 = vsyncpa [#allocation3], 0
    // Predicated region
    $region2: #{_encode.1} parent=1 // pred_check
      _
    $region3: #{_encode.1} parent=1 // pred_check_branch
      %10 = sbr.rel (0) target = $region5
    $region4: #{_encode.1} parent=1 // pred_region
      _
    $region5: #{_encode.1} parent=1 // pred_fallthru
      _
    // Predicated region
    $region6: #{_encode.1} parent=1 // pred_check
      _
    $region7: #{_encode.1} parent=1 // pred_check_branch
      %12 = sbr.rel (0) target = $region9
    $region8: #{_encode.1} parent=1 // pred_region
      _
    $region9: #{_encode.1} parent=1 // pred_fallthru
      _
    // Predicated region
    $region10: #{_encode.1} parent=1 // pred_check
      _
    $region11: #{_encode.1} parent=1 // pred_check_branch
      %14 = sbr.rel (0) target = $region13
    $region12: #{_encode.1} parent=1 // pred_region
      _
    $region13: #{_encode.1} parent=1 // pred_fallthru
      _
    %v15 = vld [vmem:[%s0] sm:$0xff]
    %v16 = vld [vmem:[%s0 + $0x8] sm:$0xff]
    %v17 = vpack.c.bf16 %v15, %v15
    %v18 = vpack.c.bf16 %v16, %v16
    %v19 = vld [vmem:[%s1] sm:$0xf]
    %v20 = vld [vmem:[%s1 + $0x4] sm:$0xf]
    %v21 = vld [vmem:[%s1 + $0x8] sm:$0xf]
    %v22 = vld [vmem:[%s1 + $0xc] sm:$0xf]
    %v23 = vld [vmem:[%s1 + $0x10] sm:$0xf]
    %v24 = vld [vmem:[%s1 + $0x14] sm:$0xf]
    %v25 = vld [vmem:[%s1 + $0x18] sm:$0xf]
    %v26 = vld [vmem:[%s1 + $0x1c] sm:$0xf]
    %v27 = vld [vmem:[%s1 + $0x20] sm:$0xf]
    %v28 = vld [vmem:[%s1 + $0x24] sm:$0xf]
    %v29 = vld [vmem:[%s1 + $0x28] sm:$0xf]
    %v30 = vld [vmem:[%s1 + $0x2c] sm:$0xf]
    %v31 = vld [vmem:[%s1 + $0x30] sm:$0xf]
    %v32 = vld [vmem:[%s1 + $0x34] sm:$0xf]
    %v33 = vld [vmem:[%s1 + $0x38] sm:$0xf]
    %v34 = vld [vmem:[%s1 + $0x3c] sm:$0xf]
    %v35 = vld [vmem:[%s1 + $0x40] sm:$0xf]
    %v36 = vld [vmem:[%s1 + $0x44] sm:$0xf]
    %v37 = vld [vmem:[%s1 + $0x48] sm:$0xf]
    %v38 = vld [vmem:[%s1 + $0x4c] sm:$0xf]
    %v39 = vld [vmem:[%s1 + $0x50] sm:$0xf]
    %v40 = vld [vmem:[%s1 + $0x54] sm:$0xf]
    %v41 = vld [vmem:[%s1 + $0x58] sm:$0xf]
    %v42 = vld [vmem:[%s1 + $0x5c] sm:$0xf]
    %v43 = vld [vmem:[%s1 + $0x60] sm:$0xf]
    %v44 = vld [vmem:[%s1 + $0x64] sm:$0xf]
    %v45 = vld [vmem:[%s1 + $0x68] sm:$0xf]
    %v46 = vld [vmem:[%s1 + $0x6c] sm:$0xf]
    %v47 = vld [vmem:[%s1 + $0x70] sm:$0xf]
    %v48 = vld [vmem:[%s1 + $0x74] sm:$0xf]
    %v49 = vld [vmem:[%s1 + $0x78] sm:$0xf]
    %v50 = vld [vmem:[%s1 + $0x7c] sm:$0xf]
    %v51 = vld [vmem:[%s2] sm:$0x1]
    %v53 = vperm.slane %v51, 0
    %v87 = vunpack.c.l.b16 %v19
    %v88 = vunpack.c.l.b16 %v20
    %v89 = vunpack.c.l.b16 %v21
    %v90 = vunpack.c.l.b16 %v22
    %v91 = vunpack.c.l.b16 %v23
    %v92 = vunpack.c.l.b16 %v24
    %v93 = vunpack.c.l.b16 %v25
    %v94 = vunpack.c.l.b16 %v26
    %v95 = vunpack.c.l.b16 %v27
    %v96 = vunpack.c.l.b16 %v28
    %v97 = vunpack.c.l.b16 %v29
    %v98 = vunpack.c.l.b16 %v30
    %v99 = vunpack.c.l.b16 %v31
    %v100 = vunpack.c.l.b16 %v32
    %v101 = vunpack.c.l.b16 %v33
    %v102 = vunpack.c.l.b16 %v34
    %v103 = vunpack.c.l.b16 %v35
    %v104 = vunpack.c.l.b16 %v36
    %v105 = vunpack.c.l.b16 %v37
    %v106 = vunpack.c.l.b16 %v38
    %v107 = vunpack.c.l.b16 %v39
    %v108 = vunpack.c.l.b16 %v40
    %v109 = vunpack.c.l.b16 %v41
    %v110 = vunpack.c.l.b16 %v42
    %v111 = vunpack.c.l.b16 %v43
    %v112 = vunpack.c.l.b16 %v44
    %v113 = vunpack.c.l.b16 %v45
    %v114 = vunpack.c.l.b16 %v46
    %v115 = vunpack.c.l.b16 %v47
    %v116 = vunpack.c.l.b16 %v48
    %v117 = vunpack.c.l.b16 %v49
    %v118 = vunpack.c.l.b16 %v50
    %v119 = vpack.c.b16 %v88, %v87
    %v120 = vpack.c.b16 %v90, %v89
    %v121 = vpack.c.b16 %v92, %v91
    %v122 = vpack.c.b16 %v94, %v93
    %v123 = vpack.c.b16 %v96, %v95
    %v124 = vpack.c.b16 %v98, %v97
    %v125 = vpack.c.b16 %v100, %v99
    %v126 = vpack.c.b16 %v102, %v101
    %v127 = vpack.c.b16 %v104, %v103
    %v128 = vpack.c.b16 %v106, %v105
    %v129 = vpack.c.b16 %v108, %v107
    %v130 = vpack.c.b16 %v110, %v109
    %v131 = vpack.c.b16 %v112, %v111
    %v132 = vpack.c.b16 %v114, %v113
    %v133 = vpack.c.b16 %v116, %v115
    %v134 = vpack.c.b16 %v118, %v117
    %151 = vmatpush.bf16.msra.mxu0 %v126
    %152 = vmatpush.bf16.msra.mxu0 %v125
    %153 = vmatpush.bf16.msra.mxu0 %v124
    %154 = vmatpush.bf16.msra.mxu0 %v123
    %155 = vmatpush.bf16.msra.mxu0 %v122
    %156 = vmatpush.bf16.msra.mxu0 %v121
    %157 = vmatpush.bf16.msra.mxu0 %v120
    %158 = vmatpush.bf16.msra.mxu0 %v119
    %159 = vmatmul.bf16.gmra.mxu0 %v17
    %v160 = vpop.f32.mrf.mxu0
    %v161 = vadd.f32 %v53, %v160
    %v162 = vpop.f32.mrf.mxu0
    %163 = vdwg.mxu0
    %164 = vmatpush.bf16.msra.mxu0 %v134
    %165 = vmatpush.bf16.msra.mxu0 %v133
    %166 = vmatpush.bf16.msra.mxu0 %v132
    %167 = vmatpush.bf16.msra.mxu0 %v131
    %168 = vmatpush.bf16.msra.mxu0 %v130
    %169 = vmatpush.bf16.msra.mxu0 %v129
    %170 = vmatpush.bf16.msra.mxu0 %v128
    %171 = vmatpush.bf16.msra.mxu0 %v127
    %172 = vmatmul.bf16.gmra.mxu0 %v18
    %v173 = vpop.f32.mrf.mxu0
    %v174 = vadd.f32 %v161, %v173
    %v175 = vpop.f32.mrf.mxu0
    %176 = vdwg.mxu0
    %177 = vst [vmem:[#allocation2] sm:$0xff] %v174
    // Predicated region
    $region14: #{_encode.1} parent=1 // pred_check
      _
    $region15: #{_encode.1} parent=1 // pred_check_branch
      %179 = sbr.rel (0) target = $region17
    $region16: #{_encode.1} parent=1 // pred_region
      %181 = vsyncadd [#allocation3], 0
      %s183 = sshll.u32 [#allocation2], 4
      %s184 = int_to_ptr.vmem [resolvable:$true] %s183
      %s185 = sshll.u32 %s3, 4
      %s186 = int_to_ptr.hbm [resolvable:$true] %s185
      %188 = dma.vmem_to_hbm [thread:$0]  %s184, 128, %s186, [#allocation3]
    $region17: #{_encode.1} parent=1 // pred_fallthru
      _
    // Predicated region
    $region18: #{_encode.1} parent=1 // pred_check
      _
    $region19: #{_encode.1} parent=1 // pred_check_branch
      %190 = sbr.rel (0) target = $region21
    $region20: #{_encode.1} parent=1 // pred_region
      %192 = dma.done [#allocation3], 128
    $region21: #{_encode.1} parent=1 // pred_fallthru
      _
    %193 = vsyncpa [#allocation3], 1

</llo_original>
